<compile_context>
chip_gen: v7x
topology: tpu7x:2x2x1
jax: 0.10.0
libtpu: 0.0.40
codegen_flags: <defaults>
</compile_context>

<pallas_src>
import jax
import jax.numpy as jnp
from jax.experimental import pallas as pl
from jax.experimental.pallas import tpu as pltpu

SOFTPLUS_THRESHOLD = 20.0   # torch F.softplus default threshold (beta=1)
CLAMP_MIN = 0.0001
CLAMP_MAX = 10000.0

# ~2 MiB of f32 per block (512K elements).
_MAX_BLOCK_ELEMS = 512 * 1024


def _dispact_kernel(x_ref, o_ref):
    # Upcast so bf16/fp16 inputs get f32 exp/log1p before the final cast
    # (no-op for f32 inputs).
    x = x_ref[...].astype(jnp.float32)
    # torch F.softplus(beta=1, threshold=20): x > 20 -> x, else log1p(exp(x)).
    sp = jnp.where(
        x > SOFTPLUS_THRESHOLD,
        x,
        jnp.log1p(jnp.exp(jnp.minimum(x, SOFTPLUS_THRESHOLD))),
    )
    o_ref[...] = jnp.clip(sp, CLAMP_MIN, CLAMP_MAX).astype(o_ref.dtype)


def dispact(x):
    """clamp(softplus(x), 1e-4, 1e4), elementwise, for any input shape."""
    orig_shape = x.shape
    orig_dtype = x.dtype
    n = x.size
    if n == 0:
        return x

    flat = x.reshape(-1)            # contiguous reshape: metadata only

    # Tiny inputs: one full-array block (full-dim exception to the (8,128)
    # rule) -> no padding, no grid.
    if n < 1024:
        out = pl.pallas_call(
            _dispact_kernel,
            out_shape=jax.ShapeDtypeStruct((1, n), orig_dtype),
        )(flat.reshape(1, n))
        return out.reshape(orig_shape)

    # Pick the widest lane-aligned column count that divides n so the common
    # case needs no pad copy and no slice copy on the way out.
    cols = next((c for c in (2048, 1024, 512, 256, 128) if n % c == 0), None)
    if cols is None:
        # Ragged tail: pad once up to a lane multiple (single extra copy).
        cols = 512
        padded_n = pl.cdiv(n, cols) * cols
        flat = jnp.pad(flat, (0, padded_n - n))
    else:
        padded_n = n
    rows = padded_n // cols

    if rows * cols <= _MAX_BLOCK_ELEMS:
        block_rows = rows           # single block == full array dims
        grid = (1,)
    else:
        block_rows = (_MAX_BLOCK_ELEMS // cols) // 8 * 8
        grid = (pl.cdiv(rows, block_rows),)   # ragged last block is masked

    out2 = pl.pallas_call(
        _dispact_kernel,
        out_shape=jax.ShapeDtypeStruct((rows, cols), orig_dtype),
        grid=grid,
        in_specs=[pl.BlockSpec((block_rows, cols), lambda i: (i, 0))],
        out_specs=pl.BlockSpec((block_rows, cols), lambda i: (i, 0)),
        compiler_params=pltpu.CompilerParams(
            dimension_semantics=("parallel",),
        ),
    )(flat.reshape(rows, cols))

    if padded_n == n:
        return out2.reshape(orig_shape)
    return out2.reshape(-1)[:n].reshape(orig_shape)


if __name__ == "__main__":
    key = jax.random.PRNGKey(0)
    k1, k2, k3, k4 = jax.random.split(key, 4)

    # Scale so inputs exercise both softplus branches (|x| > 20) and the
    # lower clamp (softplus(x) < 1e-4 for x < ~-9.2).
    cases = [
        jax.random.normal(k1, (16, 384), jnp.float32) * 12.0,   # no-pad, 1 block
        jax.random.normal(k2, (1200, 520), jnp.float32) * 3.0,  # no-pad, 2-block grid
        jax.random.normal(k3, (33, 1000), jnp.float32) * 3.0,   # ragged -> pad path
        jax.random.normal(k4, (7, 13, 11), jnp.float32) * 3.0,  # tiny path
    ]

    for x in cases:
        y = dispact(x)
        jax.block_until_ready(y)
        ref = jnp.clip(jax.nn.softplus(x), CLAMP_MIN, CLAMP_MAX)
        assert y.shape == x.shape and y.dtype == x.dtype
        err = float(jnp.max(jnp.abs(y - ref)))
        assert jnp.allclose(y, ref, rtol=1e-5, atol=1e-6), (x.shape, err)

    print("KERNEL_OK")
</pallas_src>

<mosaic_0001>
module attributes {stable_mosaic.version = 11 : i64} {
  func.func @_dispact_kernel(%arg0: i32, %arg1: memref<3x2048xf32, #tpu.memory_space<vmem>>, %arg2: memref<3x2048xf32, #tpu.memory_space<vmem>>) attributes {dimension_semantics = [#tpu.dimension_semantics<parallel>], iteration_bounds = array<i64: 1>, scalar_prefetch = 0 : i64, scratch_operands = 0 : i64, tpu.core_type = #tpu.core_type<tc>, window_params = [{transform_indices = @transform_0, window_bounds = array<i64: 3, 2048>}, {transform_indices = @transform_1, window_bounds = array<i64: 3, 2048>}]} {
    %c0 = arith.constant 0 : index
    %c0_0 = arith.constant 0 : index
    %0 = vector.load %arg1[%c0, %c0_0] : memref<3x2048xf32, #tpu.memory_space<vmem>>, vector<3x2048xf32>
    %cst = arith.constant 2.000000e+01 : f32
    %1 = vector.broadcast %cst : f32 to vector<3x2048xf32>
    %2 = arith.cmpf ogt, %0, %1 : vector<3x2048xf32>
    %cst_1 = arith.constant 2.000000e+01 : f32
    %3 = vector.broadcast %cst_1 : f32 to vector<3x2048xf32>
    %4 = arith.minimumf %0, %3 : vector<3x2048xf32>
    %5 = math.exp %4 : vector<3x2048xf32>
    %6 = math.log1p %5 : vector<3x2048xf32>
    %7 = arith.select %2, %0, %6 : vector<3x2048xi1>, vector<3x2048xf32>
    %cst_2 = arith.constant 9.99999974E-5 : f32
    %cst_3 = arith.constant 1.000000e+04 : f32
    %8 = vector.broadcast %cst_2 : f32 to vector<3x2048xf32>
    %9 = arith.maximumf %8, %7 : vector<3x2048xf32>
    %10 = vector.broadcast %cst_3 : f32 to vector<3x2048xf32>
    %11 = arith.minimumf %10, %9 : vector<3x2048xf32>
    %c0_4 = arith.constant 0 : index
    %c0_5 = arith.constant 0 : index
    %12 = vector.load %arg2[%c0_4, %c0_5] : memref<3x2048xf32, #tpu.memory_space<vmem>>, vector<3x2048xf32>
    tpu.vector_store %arg2[%c0_4, %c0_5], %11 {strides = array<i32>} : memref<3x2048xf32, #tpu.memory_space<vmem>>, vector<3x2048xf32>,
    return
  }
  func.func @transform_0(%arg0: i32) -> (i32, i32) {
    %c0_i32 = arith.constant 0 : i32
    %c0_i32_0 = arith.constant 0 : i32
    return %arg0, %c0_i32 : i32, i32
  }
  func.func @transform_1(%arg0: i32) -> (i32, i32) {
    %c0_i32 = arith.constant 0 : i32
    %c0_i32_0 = arith.constant 0 : i32
    return %arg0, %c0_i32 : i32, i32
  }
}

</mosaic_0001>

<llo_original>
// kernel: tpu_custom_call.1
$region0: #{tpu_custom_call.1}
  #allocation0 [shape = 'u32[]', space=smem, size = 0x4, offset = 0x4, fixed_abs, tag = 'smem constant byte address 0x4 - core index']
  #allocation1 [shape = 'u32[144,128]{1,0:T(1,128)}', space=vmem, size = 0x12000, scoped, tag = 'internal scratch']
  %s0 = inlined_call_operand.hbm [shape: f32[3,2048], index: 0, kind: input, shape index: {}]
  %s1 = inlined_call_operand.hbm [shape: f32[3,2048], index: 1, kind: output, shape index: {}]
  %s2 = sld [smem:[#allocation0]]
  $region18: #{tpu_custom_call.1} parent=0
    _
  %s4 = ssub.s32 1, %s2
  %s5 = scalar_select 0, %s4, %s2
  $region1: #{tpu_custom_call.1} parent=0
    #allocation2 [shape = 'u8[32768]{0}', space=vmem, size = 0x8000, scoped, tag = 'input window, operand 0, single buffered']
    #allocation3 [shape = 's32[1]{0}', space=sflag, size = 0x4, scoped, tag = 'scoped memory for tpu_custom_call.1']
    #allocation4 [shape = 's32[1]{0}', space=sflag, size = 0x4, scoped, tag = 'scoped memory for tpu_custom_call.1']
    #allocation5 [shape = 'u8[32768]{0}', space=vmem, size = 0x8000, scoped, tag = 'output window, operand 0, single buffered']
    %6 = vsyncpa [#allocation3], 0
    %7 = vsyncpa [#allocation4], 0
    // Predicated region
    $region2: #{tpu_custom_call.1} parent=1 // pred_check
      _
    $region3: #{tpu_custom_call.1} parent=1 // pred_check_branch
      %9 = sbr.rel (0) target = $region5
    $region4: #{tpu_custom_call.1} parent=1 // pred_region
      %s11 = ssub.s32 1024, 1024
      %12 = vsyncadd [#allocation3], %s11
      %s14 = sshll.u32 [#allocation2], 4
      %s15 = int_to_ptr.vmem [resolvable:$true] %s14
      %17 = dma.hbm_to_vmem [thread:$0]  %s0, 1024, %s15, [#allocation3]
    $region5: #{tpu_custom_call.1} parent=1 // pred_fallthru
      _
    // Predicated region
    $region6: #{tpu_custom_call.1} parent=1 // pred_check
      _
    $region7: #{tpu_custom_call.1} parent=1 // pred_check_branch
      %19 = sbr.rel (0) target = $region9
    $region8: #{tpu_custom_call.1} parent=1 // pred_region
      %20 = dma.done [#allocation3], 1024
    $region9: #{tpu_custom_call.1} parent=1 // pred_fallthru
      _
    %v21 = vld [vmem:[#allocation2] sm:$0x77]
    %v22 = vld [vmem:[#allocation2 + $0x8] sm:$0x77]
    %v23 = vld [vmem:[#allocation2 + $0x10] sm:$0x77]
    %v24 = vld [vmem:[#allocation2 + $0x18] sm:$0x77]
    %v25 = vld [vmem:[#allocation2 + $0x20] sm:$0x77]
    %v26 = vld [vmem:[#allocation2 + $0x28] sm:$0x77]
    %v27 = vld [vmem:[#allocation2 + $0x30] sm:$0x77]
    %v28 = vld [vmem:[#allocation2 + $0x38] sm:$0x77]
    %vm29 = vcmp.gt.f32.partialorder %v21, 20.0
    %vm30 = vcmp.gt.f32.partialorder %v22, 20.0
    %vm31 = vcmp.gt.f32.partialorder %v23, 20.0
    %vm32 = vcmp.gt.f32.partialorder %v24, 20.0
    %vm33 = vcmp.gt.f32.partialorder %v25, 20.0
    %vm34 = vcmp.gt.f32.partialorder %v26, 20.0
    %vm35 = vcmp.gt.f32.partialorder %v27, 20.0
    %vm36 = vcmp.gt.f32.partialorder %v28, 20.0
    %v37 = vmin.f32 %v21, 20.0
    %v38 = vmin.f32 %v22, 20.0
    %v39 = vmin.f32 %v23, 20.0
    %v40 = vmin.f32 %v24, 20.0
    %v41 = vmin.f32 %v25, 20.0
    %v42 = vmin.f32 %v26, 20.0
    %v43 = vmin.f32 %v27, 20.0
    %v44 = vmin.f32 %v28, 20.0
    %v45 = vmul.f32 %v37, 1.442695
    %v46 = vpow.pop %v45
    %v47 = vmul.f32 %v38, 1.442695
    %v48 = vpow.pop %v47
    %v49 = vmul.f32 %v39, 1.442695
    %v50 = vpow.pop %v49
    %v51 = vmul.f32 %v40, 1.442695
    %v52 = vpow.pop %v51
    %v53 = vmul.f32 %v41, 1.442695
    %v54 = vpow.pop %v53
    %v55 = vmul.f32 %v42, 1.442695
    %v56 = vpow.pop %v55
    %v57 = vmul.f32 %v43, 1.442695
    %v58 = vpow.pop %v57
    %v59 = vmul.f32 %v44, 1.442695
    %v60 = vpow.pop %v59
    %v61 = vadd.f32 %v46, 1.0
    %v62 = vlog2.pop %v61
    %v63 = vmul.f32 %v62, 0.6931472
    %v64 = vmul.f32 -0.5, %v46
    %v65 = vadd.f32 %v64, 1.0
    %v66 = vmul.f32 %v65, %v46
    %v67 = vand.u32 2147483647, %v46
    %vm68 = vcmp.lt.f32.partialorder %v67, 0.0004427343
    %v69 = vsel %vm68, %v66, %v63
    %v70 = vadd.f32 %v48, 1.0
    %v71 = vlog2.pop %v70
    %v72 = vmul.f32 %v71, 0.6931472
    %v73 = vmul.f32 -0.5, %v48
    %v74 = vadd.f32 %v73, 1.0
    %v75 = vmul.f32 %v74, %v48
    %v76 = vand.u32 2147483647, %v48
    %vm77 = vcmp.lt.f32.partialorder %v76, 0.0004427343
    %v78 = vsel %vm77, %v75, %v72
    %v79 = vadd.f32 %v50, 1.0
    %v80 = vlog2.pop %v79
    %v81 = vmul.f32 %v80, 0.6931472
    %v82 = vmul.f32 -0.5, %v50
    %v83 = vadd.f32 %v82, 1.0
    %v84 = vmul.f32 %v83, %v50
    %v85 = vand.u32 2147483647, %v50
    %vm86 = vcmp.lt.f32.partialorder %v85, 0.0004427343
    %v87 = vsel %vm86, %v84, %v81
    %v88 = vadd.f32 %v52, 1.0
    %v89 = vlog2.pop %v88
    %v90 = vmul.f32 %v89, 0.6931472
    %v91 = vmul.f32 -0.5, %v52
    %v92 = vadd.f32 %v91, 1.0
    %v93 = vmul.f32 %v92, %v52
    %v94 = vand.u32 2147483647, %v52
    %vm95 = vcmp.lt.f32.partialorder %v94, 0.0004427343
    %v96 = vsel %vm95, %v93, %v90
    %v97 = vadd.f32 %v54, 1.0
    %v98 = vlog2.pop %v97
    %v99 = vmul.f32 %v98, 0.6931472
    %v100 = vmul.f32 -0.5, %v54
    %v101 = vadd.f32 %v100, 1.0
    %v102 = vmul.f32 %v101, %v54
    %v103 = vand.u32 2147483647, %v54
    %vm104 = vcmp.lt.f32.partialorder %v103, 0.0004427343
    %v105 = vsel %vm104, %v102, %v99
    %v106 = vadd.f32 %v56, 1.0
    %v107 = vlog2.pop %v106
    %v108 = vmul.f32 %v107, 0.6931472
    %v109 = vmul.f32 -0.5, %v56
    %v110 = vadd.f32 %v109, 1.0
    %v111 = vmul.f32 %v110, %v56
    %v112 = vand.u32 2147483647, %v56
    %vm113 = vcmp.lt.f32.partialorder %v112, 0.0004427343
    %v114 = vsel %vm113, %v111, %v108
    %v115 = vadd.f32 %v58, 1.0
    %v116 = vlog2.pop %v115
    %v117 = vmul.f32 %v116, 0.6931472
    %v118 = vmul.f32 -0.5, %v58
    %v119 = vadd.f32 %v118, 1.0
    %v120 = vmul.f32 %v119, %v58
    %v121 = vand.u32 2147483647, %v58
    %vm122 = vcmp.lt.f32.partialorder %v121, 0.0004427343
    %v123 = vsel %vm122, %v120, %v117
    %v124 = vadd.f32 %v60, 1.0
    %v125 = vlog2.pop %v124
    %v126 = vmul.f32 %v125, 0.6931472
    %v127 = vmul.f32 -0.5, %v60
    %v128 = vadd.f32 %v127, 1.0
    %v129 = vmul.f32 %v128, %v60
    %v130 = vand.u32 2147483647, %v60
    %vm131 = vcmp.lt.f32.partialorder %v130, 0.0004427343
    %v132 = vsel %vm131, %v129, %v126
    %v133 = vsel %vm29, %v21, %v69
    %v134 = vsel %vm30, %v22, %v78
    %v135 = vsel %vm31, %v23, %v87
    %v136 = vsel %vm32, %v24, %v96
    %v137 = vsel %vm33, %v25, %v105
    %v138 = vsel %vm34, %v26, %v114
    %v139 = vsel %vm35, %v27, %v123
    %v140 = vsel %vm36, %v28, %v132
    %v141 = vmax.f32 %v133, 0.0001
    %v142 = vmax.f32 %v134, 0.0001
    %v143 = vmax.f32 %v135, 0.0001
    %v144 = vmax.f32 %v136, 0.0001
    %v145 = vmax.f32 %v137, 0.0001
    %v146 = vmax.f32 %v138, 0.0001
    %v147 = vmax.f32 %v139, 0.0001
    %v148 = vmax.f32 %v140, 0.0001
    %v149 = vmin.f32 %v141, 10000.0
    %v150 = vmin.f32 %v142, 10000.0
    %v151 = vmin.f32 %v143, 10000.0
    %v152 = vmin.f32 %v144, 10000.0
    %v153 = vmin.f32 %v145, 10000.0
    %v154 = vmin.f32 %v146, 10000.0
    %v155 = vmin.f32 %v147, 10000.0
    %v156 = vmin.f32 %v148, 10000.0
    %157 = vst [vmem:[#allocation5] sm:$0x77] %v149
    %158 = vst [vmem:[#allocation5 + $0x8] sm:$0x77] %v150
    %159 = vst [vmem:[#allocation5 + $0x10] sm:$0x77] %v151
    %160 = vst [vmem:[#allocation5 + $0x18] sm:$0x77] %v152
    %161 = vst [vmem:[#allocation5 + $0x20] sm:$0x77] %v153
    %162 = vst [vmem:[#allocation5 + $0x28] sm:$0x77] %v154
    %163 = vst [vmem:[#allocation5 + $0x30] sm:$0x77] %v155
    %164 = vst [vmem:[#allocation5 + $0x38] sm:$0x77] %v156
    // Predicated region
    $region10: #{tpu_custom_call.1} parent=1 // pred_check
      _
    $region11: #{tpu_custom_call.1} parent=1 // pred_check_branch
      %166 = sbr.rel (0) target = $region13
    $region12: #{tpu_custom_call.1} parent=1 // pred_region
      %s168 = ssub.s32 1024, 1024
      %169 = vsyncadd [#allocation4], %s168
      %s171 = sshll.u32 [#allocation5], 4
      %s172 = int_to_ptr.vmem [resolvable:$true] %s171
      %174 = dma.vmem_to_hbm [thread:$0]  %s172, 1024, %s1, [#allocation4]
    $region13: #{tpu_custom_call.1} parent=1 // pred_fallthru
      _
    // Predicated region
    $region14: #{tpu_custom_call.1} parent=1 // pred_check
      _
    $region15: #{tpu_custom_call.1} parent=1 // pred_check_branch
      %176 = sbr.rel (0) target = $region17
    $region16: #{tpu_custom_call.1} parent=1 // pred_region
      %177 = dma.done [#allocation4], 1024
    $region17: #{tpu_custom_call.1} parent=1 // pred_fallthru
      _
    %178 = vsyncpa [#allocation3], 1
    %179 = vsyncpa [#allocation4], 1

</llo_original>
